<compile_context>
chip_gen: v7x
topology: tpu7x:2x2x1
jax: 0.10.0
libtpu: 0.0.40
codegen_flags: <defaults>
</compile_context>

<pallas_src>
import jax
import jax.numpy as jnp
import numpy as np
from jax.experimental import pallas as pl
from jax.experimental.pallas import tpu as pltpu

EPS = 1e-5            # nn.BatchNorm2d default eps
NUM_CLASSES = 10
LANES = 128           # activation channels are zero-padded to one full lane tile


# --------------------------- pltpu.roll sign probe --------------------------- #

_ROLL_SIGN = None


def _roll_sign():
    """Return s such that pltpu.roll(x, (s*d) % m, 0)[i] == x[(i + d) % m].

    Probed once with a tiny kernel so the tap-shift sign is robust to the rotate
    convention of the installed JAX / Mosaic version.  Called host-side (before
    any jit trace) from pack_params.
    """
    global _ROLL_SIGN
    if _ROLL_SIGN is None:
        def probe(x_ref, o_ref):
            o_ref[...] = pltpu.roll(x_ref[...], 1, 0)

        x = jnp.tile(jnp.arange(8, dtype=jnp.float32)[:, None], (1, LANES))
        out = pl.pallas_call(
            probe, out_shape=jax.ShapeDtypeStruct((8, LANES), jnp.float32))(x)
        _ROLL_SIGN = 1 if float(out[0, 0]) == 1.0 else -1   # numpy convention -> -1
    return _ROLL_SIGN


# ------------------------------ fused kernel --------------------------------- #

def _build_kernel(n, h_in, w_in):
    """Build the fused forward kernel for batch n and input spatial (h_in, w_in)."""
    sign = _roll_sign()

    wp_in = w_in + 2
    m_in = n * (h_in + 2) * wp_in
    h2, w2 = h_in // 2, w_in // 2
    wp2, m2 = w2 + 2, n * (h2 + 2) * (w2 + 2)
    h3, w3 = h2 // 2, w2 // 2
    wp3, m3 = w3 + 2, n * (h3 + 2) * (w3 + 2)
    inv2 = 1.0 / float(n * h2 * w2)     # BN interior element count, layer2
    inv3 = 1.0 / float(n * h3 * w3)     # BN interior element count, layer3

    def kernel(x_ref,
               t2w1_ref, t2w2_ref, t2wd_ref, t2bn_ref,
               s2w1_ref, s2w2_ref, s2bn_ref, g2_ref, msk2_ref,
               t3w1_ref, t3w2_ref, t3wd_ref, t3bn_ref,
               s3w1_ref, s3w2_ref, s3bn_ref, g3_ref, msk3_ref,
               pool_ref, fcw_ref, fcb_ref,
               o_ref,
               wscr_ref, act2_ref, act3_ref):
        f32 = jnp.float32

        def expand(wc, cin, cout):
            # Scatter the compact (9*cin, cout) tap weights into the zero-padded
            # (9, 128, 128) weight scratch (sublane/lane-aligned block stores).
            for k in range(9):
                wscr_ref[k, :cin, :cout] = wc[k * cin:(k + 1) * cin, :]

        def conv3x3(x, wp, m):
            # 3x3 stride-1 conv over a flat zero-padded frame: 9 accumulated MXU
            # matmuls; the (kh, kw) tap shift is a sublane roll of the frame.
            acc = None
            for kh in range(3):
                for kw in range(3):
                    d = (kh - 1) * wp + (kw - 1)
                    xs = x if d == 0 else pltpu.roll(x, (sign * d) % m, 0)
                    t = jnp.dot(xs, wscr_ref[kh * 3 + kw],
                                preferred_element_type=f32)
                    acc = t if acc is None else acc + t
            return acc

        def bn(y, gamma, beta, mask, inv_cnt):
            # Training-mode BatchNorm over interior rows (two-pass variance).
            mean = jnp.sum(y * mask, axis=0, keepdims=True) * inv_cnt
            diff = (y - mean) * mask
            var = jnp.sum(diff * diff, axis=0, keepdims=True) * inv_cnt
            return (y - mean) * (jax.lax.rsqrt(var + EPS) * gamma) + beta

        def transition(x_in, wp_src, m_src, w1_ref, w2_ref, wd_ref, bnm_ref,
                       gsel, mask, inv_cnt, wp_dst, m_dst):
            # First BasicBlock of a stage: conv3x3/s2 + BN + ReLU, conv3x3 + BN,
            # 1x1/s2 downsample + BN, residual add, ReLU.
            cin = w1_ref.shape[0] // 9
            cmid = w1_ref.shape[1]
            expand(w1_ref[...], cin, cmid)
            # stride-2 == full-frame stride-1 conv, then subsample + re-frame as
            # a single matmul with the precomputed 0/1 selection matrix.
            y1 = jnp.dot(gsel, conv3x3(x_in, wp_src, m_src),
                         preferred_element_type=f32)
            y1 = jnp.maximum(bn(y1, bnm_ref[0:1, :], bnm_ref[1:2, :],
                                mask, inv_cnt), 0.0) * mask
            expand(w2_ref[...], cmid, cmid)
            y2 = bn(conv3x3(y1, wp_dst, m_dst), bnm_ref[2:3, :], bnm_ref[3:4, :],
                    mask, inv_cnt)
            xs = jnp.dot(gsel, x_in, preferred_element_type=f32)
            idn = bn(jnp.dot(xs, wd_ref[...], preferred_element_type=f32),
                     bnm_ref[4:5, :], bnm_ref[5:6, :], mask, inv_cnt)
            return jnp.maximum(y2 + idn, 0.0) * mask

        def run_stack(act_ref, w1s_ref, w2s_ref, bns_ref, wp, m, mask, inv_cnt):
            # The 17 identity BasicBlocks of a stage; the activation stays
            # resident in VMEM, per-block weights are dynamically indexed.
            c = w1s_ref.shape[2]

            def body(i, carry):
                act = act_ref[...]
                bnm = bns_ref[i]
                expand(w1s_ref[i], c, c)
                y1 = jnp.maximum(bn(conv3x3(act, wp, m), bnm[0:1, :],
                                    bnm[1:2, :], mask, inv_cnt), 0.0) * mask
                expand(w2s_ref[i], c, c)
                y2 = bn(conv3x3(y1, wp, m), bnm[2:3, :], bnm[3:4, :],
                        mask, inv_cnt)
                act_ref[...] = jnp.maximum(y2 + act, 0.0) * mask
                return carry

            jax.lax.fori_loop(0, w1s_ref.shape[0], body, 0)

        # Tap-weight scratch: zeroed exactly once -- successive conv footprints
        # (cin, cout) grow monotonically (16x32 -> 32x32 -> 32x64 -> 64x64), so
        # everything outside the current footprint stays zero.
        wscr_ref[...] = jnp.zeros_like(wscr_ref)

        msk2 = msk2_ref[...]
        msk3 = msk3_ref[...]

        # layer2: transition block + 17 identity blocks (32 channels, 8x8 frame).
        act2_ref[...] = transition(x_ref[...], wp_in, m_in,
                                   t2w1_ref, t2w2_ref, t2wd_ref, t2bn_ref,
                                   g2_ref[...], msk2, inv2, wp2, m2)
        run_stack(act2_ref, s2w1_ref, s2w2_ref, s2bn_ref, wp2, m2, msk2, inv2)

        # layer3: transition block + 17 identity blocks (64 channels, 4x4 frame).
        act3_ref[...] = transition(act2_ref[...], wp2, m2,
                                   t3w1_ref, t3w2_ref, t3wd_ref, t3bn_ref,
                                   g3_ref[...], msk3, inv3, wp3, m3)
        run_stack(act3_ref, s3w1_ref, s3w2_ref, s3bn_ref, wp3, m3, msk3, inv3)

        # AdaptiveAvgPool2d((1,1)) as a matmul with the averaging matrix, + fc.
        pooled = jnp.dot(pool_ref[...], act3_ref[...], preferred_element_type=f32)
        logits = jnp.dot(pooled, fcw_ref[...],
                         preferred_element_type=f32) + fcb_ref[...]
        o_ref[...] = logits[:n, :]

    return kernel


def _full_spec(a):
    zeros = (0,) * a.ndim
    return pl.BlockSpec(tuple(a.shape), lambda i: zeros)


def resnet_server_forward(x_nchw, packed):
    """Full ResNetServer forward (layer2 + layer3 + avgpool + fc) in one pallas_call."""
    n, c, h_in, w_in = x_nchw.shape

    # Layout plumbing (outside the kernel): NCHW -> NHWC, zero pad-ring, channel
    # pad to 128 lanes, flatten the padded frame to rows.
    x = jnp.transpose(x_nchw, (0, 2, 3, 1)).astype(jnp.float32)
    x = jnp.pad(x, ((0, 0), (1, 1), (1, 1), (0, LANES - c)))
    x_flat = x.reshape(n * (h_in + 2) * (w_in + 2), LANES)

    t2, s2, t3, s3 = packed["t2"], packed["s2"], packed["t3"], packed["s3"]
    args = [x_flat,
            t2["w1"], t2["w2"], t2["wd"], t2["bn"],
            s2["w1"], s2["w2"], s2["bn"], packed["g2"], packed["m2"],
            t3["w1"], t3["w2"], t3["wd"], t3["bn"],
            s3["w1"], s3["w2"], s3["bn"], packed["g3"], packed["m3"],
            packed["pool"], packed["fcw"], packed["fcb"]]

    m_in = x_flat.shape[0]
    m2 = packed["m2"].shape[0]
    m3 = packed["m3"].shape[0]
    conv_f = lambda m: 9 * 2 * m * LANES * LANES
    flops = (conv_f(m_in) + 36 * conv_f(m2) + 35 * conv_f(m3)
             + 2 * (2 * m2 * m_in * LANES) + 2 * (2 * m3 * m2 * LANES)
             + 2 * m2 * LANES * LANES + 2 * m3 * LANES * LANES
             + 2 * 8 * m3 * LANES + 2 * 8 * LANES * NUM_CLASSES)
    nbytes = sum(int(a.size) * 4 for a in args) + n * NUM_CLASSES * 4

    return pl.pallas_call(
        _build_kernel(n, h_in, w_in),
        out_shape=jax.ShapeDtypeStruct((n, NUM_CLASSES), jnp.float32),
        grid=(1,),
        in_specs=[_full_spec(a) for a in args],
        out_specs=pl.BlockSpec((n, NUM_CLASSES), lambda i: (0, 0)),
        scratch_shapes=[
            pltpu.VMEM((9, LANES, LANES), jnp.float32),   # expanded tap weights
            pltpu.VMEM((m2, LANES), jnp.float32),         # layer2 resident activation
            pltpu.VMEM((m3, LANES), jnp.float32),         # layer3 resident activation
        ],
        compiler_params=pltpu.CompilerParams(
            dimension_semantics=("arbitrary",),
            vmem_limit_bytes=48 * 1024 * 1024,
        ),
        cost_estimate=pl.CostEstimate(flops=int(flops),
                                      transcendentals=74 * LANES,
                                      bytes_accessed=int(nbytes)),
    )(*args)


# ---------------------------- parameters (synthetic) -------------------------- #

def init_params(key, n_blocks=18, num_classes=NUM_CLASSES):
    def kaiming(k, kh, kw, cin, cout):
        fan_out = kh * kw * cout          # kaiming_normal_, mode='fan_out', relu
        return jax.random.normal(k, (kh, kw, cin, cout), jnp.float32) * (2.0 / fan_out) ** 0.5

    keys = iter(jax.random.split(key, 2 * (2 * n_blocks + 1) + 2))

    def make_stage(cin, planes):
        blocks = []
        for i in range(n_blocks):
            in_c = cin if i == 0 else planes
            blk = dict(
                w1=kaiming(next(keys), 3, 3, in_c, planes),
                g1=jnp.ones((planes,), jnp.float32), b1=jnp.zeros((planes,), jnp.float32),
                w2=kaiming(next(keys), 3, 3, planes, planes),
                g2=jnp.ones((planes,), jnp.float32), b2=jnp.zeros((planes,), jnp.float32),
            )
            if i == 0:   # stride-2 block gets the 1x1 downsample + BN
                blk["wd"] = kaiming(next(keys), 1, 1, in_c, planes)
                blk["gd"] = jnp.ones((planes,), jnp.float32)
                blk["bd"] = jnp.zeros((planes,), jnp.float32)
            blocks.append(blk)
        return blocks

    layer2 = make_stage(16, 32)
    layer3 = make_stage(32, 64)
    bound = 1.0 / (64 ** 0.5)
    fc_w = jax.random.uniform(next(keys), (64, num_classes), jnp.float32, -bound, bound)
    fc_b = jax.random.uniform(next(keys), (num_classes,), jnp.float32, -bound, bound)
    return dict(layer2=layer2, layer3=layer3, fc_w=fc_w, fc_b=fc_b)


# ------------------------- kernel-ready packing + geometry -------------------- #

def _interior_mask(n, h, w):
    hp, wp = h + 2, w + 2
    m = np.zeros((n * hp * wp, 1), np.float32)
    for b in range(n):
        base = b * hp * wp
        for i in range(1, h + 1):
            m[base + i * wp + 1: base + i * wp + w + 1, 0] = 1.0
    return jnp.asarray(m)


def _subsample_matrix(n, h_in, w_in):
    """0/1 matrix realizing the stride-2 subsample + re-framing as one matmul."""
    h_out, w_out = h_in // 2, w_in // 2
    hpi, wpi = h_in + 2, w_in + 2
    hpo, wpo = h_out + 2, w_out + 2
    g = np.zeros((n * hpo * wpo, n * hpi * wpi), np.float32)
    for b in range(n):
        for io in range(h_out):
            for jo in range(w_out):
                r_out = b * hpo * wpo + (io + 1) * wpo + (jo + 1)
                r_in = b * hpi * wpi + (2 * io + 1) * wpi + (2 * jo + 1)
                g[r_out, r_in] = 1.0
    return jnp.asarray(g)


def _pool_matrix(n, h, w):
    """Averaging matrix (max(8,n), frame_rows): per-sample spatial mean of interior."""
    hp, wp = h + 2, w + 2
    a = np.zeros((max(8, n), n * hp * wp), np.float32)
    for b in range(n):
        base = b * hp * wp
        for i in range(1, h + 1):
            a[b, base + i * wp + 1: base + i * wp + w + 1] = 1.0 / (h * w)
    return jnp.asarray(a)


def pack_params(params, n, h_in=16, w_in=16):
    """Repack per-block parameters into the kernel-ready layout + geometry matrices."""
    _roll_sign()   # probe pltpu.roll's rotate convention host-side (before jit)

    def wflat(w):                       # (3,3,cin,cout) HWIO -> (9*cin, cout)
        kh, kw, cin, cout = w.shape
        return w.reshape(kh * kw * cin, cout)

    def pad_g(g):                       # pad gamma with 1 so padded channels stay 0
        return jnp.pad(g, (0, LANES - g.shape[0]), constant_values=1.0)

    def pad_b(b):
        return jnp.pad(b, (0, LANES - b.shape[0]))

    def bn_rows(pairs):                 # -> (8, 128): [gamma, beta] rows, zero padded
        rows = []
        for g, b in pairs:
            rows.append(pad_g(g))
            rows.append(pad_b(b))
        while len(rows) < 8:
            rows.append(jnp.zeros((LANES,), jnp.float32))
        return jnp.stack(rows)

    def pack_stage(blocks):
        b0 = blocks[0]
        cin, c = b0["w1"].shape[2], b0["w1"].shape[3]
        trans = dict(
            w1=wflat(b0["w1"]),
            w2=wflat(b0["w2"]),
            wd=jnp.pad(b0["wd"].reshape(cin, c), ((0, LANES - cin), (0, LANES - c))),
            bn=bn_rows([(b0["g1"], b0["b1"]), (b0["g2"], b0["b2"]),
                        (b0["gd"], b0["bd"])]),
        )
        rest = blocks[1:]
        stack = dict(
            w1=jnp.stack([wflat(b["w1"]) for b in rest]),
            w2=jnp.stack([wflat(b["w2"]) for b in rest]),
            bn=jnp.stack([bn_rows([(b["g1"], b["b1"]), (b["g2"], b["b2"])])
                          for b in rest]),
        )
        return trans, stack

    t2, s2 = pack_stage(params["layer2"])
    t3, s3 = pack_stage(params["layer3"])
    h2, w2 = h_in // 2, w_in // 2
    h3, w3 = h2 // 2, w2 // 2

    return dict(
        t2=t2, s2=s2,
        g2=_subsample_matrix(n, h_in, w_in), m2=_interior_mask(n, h2, w2),
        t3=t3, s3=s3,
        g3=_subsample_matrix(n, h2, w2), m3=_interior_mask(n, h3, w3),
        pool=_pool_matrix(n, h3, w3),
        fcw=jnp.pad(params["fc_w"], ((0, LANES - params["fc_w"].shape[0]), (0, 0))),
        fcb=params["fc_b"].reshape(1, -1),
    )


# ------------------------------ pure-JAX reference ---------------------------- #

def _ref_conv_bn(x, w, gamma, beta, stride=1, pad=1):
    y = jax.lax.conv_general_dilated(
        x, w, window_strides=(stride, stride), padding=((pad, pad), (pad, pad)),
        dimension_numbers=("NHWC", "HWIO", "NHWC"),
        precision=jax.lax.Precision.HIGHEST)
    mean = jnp.mean(y, axis=(0, 1, 2))
    var = jnp.mean((y - mean) ** 2, axis=(0, 1, 2))
    return (y - mean) * jax.lax.rsqrt(var + EPS) * gamma + beta


def ref_forward(x_nchw, params):
    x = jnp.transpose(x_nchw, (0, 2, 3, 1)).astype(jnp.float32)
    for stage in ("layer2", "layer3"):
        for i, blk in enumerate(params[stage]):
            stride = 2 if i == 0 else 1
            identity = x
            out = jnp.maximum(
                _ref_conv_bn(x, blk["w1"], blk["g1"], blk["b1"], stride=stride), 0.0)
            out = _ref_conv_bn(out, blk["w2"], blk["g2"], blk["b2"])
            if "wd" in blk:
                identity = _ref_conv_bn(x, blk["wd"], blk["gd"], blk["bd"],
                                        stride=stride, pad=0)
            x = jnp.maximum(out + identity, 0.0)
    pooled = jnp.mean(x, axis=(1, 2))
    return jnp.dot(pooled, params["fc_w"],
                   precision=jax.lax.Precision.HIGHEST) + params["fc_b"]


# ------------------------------------- main ----------------------------------- #

if __name__ == "__main__":
    key = jax.random.PRNGKey(0)
    k_param, k_x = jax.random.split(key)
    params = init_params(k_param)

    # server input = client output: NCHW, 16 channels, 16x16 spatial, batch 2
    x = jax.random.normal(k_x, (2, 16, 16, 16), jnp.float32)
    packed = pack_params(params, n=x.shape[0], h_in=x.shape[2], w_in=x.shape[3])

    out = jax.block_until_ready(jax.jit(resnet_server_forward)(x, packed))
    assert out.shape == (2, NUM_CLASSES), out.shape

    ref = jax.block_until_ready(jax.jit(ref_forward)(x, params))
    max_err = float(jnp.max(jnp.abs(out - ref)))
    assert jnp.allclose(out, ref, rtol=2e-3, atol=2e-3), f"max_err={max_err}"

    print("KERNEL_OK")
</pallas_src>

<mosaic_0001>
module attributes {stable_mosaic.version = 11 : i64} {
  func.func @probe(%arg0: memref<8x128xf32, #tpu.memory_space<vmem>>, %arg1: memref<8x128xf32, #tpu.memory_space<vmem>>) attributes {dimension_semantics = [], scalar_prefetch = 0 : i64, scratch_operands = 0 : i64, tpu.core_type = #tpu.core_type<tc>} {
    %c0 = arith.constant 0 : index
    %c0_0 = arith.constant 0 : index
    %0 = vector.load %arg0[%c0, %c0_0] : memref<8x128xf32, #tpu.memory_space<vmem>>, vector<8x128xf32>
    %c1_i32 = arith.constant 1 : i32
    %1 = tpu.dynamic_rotate %0 by %c1_i32 dim 0 : vector<8x128xf32>, i32 -> vector<8x128xf32>
    %c0_1 = arith.constant 0 : index
    %c0_2 = arith.constant 0 : index
    %2 = vector.load %arg1[%c0_1, %c0_2] : memref<8x128xf32, #tpu.memory_space<vmem>>, vector<8x128xf32>
    tpu.vector_store %arg1[%c0_1, %c0_2], %1 {strides = array<i32>} : memref<8x128xf32, #tpu.memory_space<vmem>>, vector<8x128xf32>,
    return
  }
}

</mosaic_0001>

<llo_original>
// kernel: tpu_custom_call.1
$region0: #{tpu_custom_call.1}
  #allocation0 [shape = 'u32[]', space=smem, size = 0x4, offset = 0x4, fixed_abs, tag = 'smem constant byte address 0x4 - core index']
  #allocation1 [shape = 'u32[144,128]{1,0:T(1,128)}', space=vmem, size = 0x12000, scoped, tag = 'internal scratch']
  %s0 = inlined_call_operand.hbm [shape: f32[8,128], index: 0, kind: input, shape index: {}]
  %s1 = inlined_call_operand.hbm [shape: f32[8,128], index: 1, kind: output, shape index: {}]
  %s2 = sld [smem:[#allocation0]]
  $region18: #{tpu_custom_call.1} parent=0
    _
  %s4 = ssub.s32 1, %s2
  %s5 = scalar_select 0, %s4, %s2
  $region1: #{tpu_custom_call.1} parent=0
    #allocation2 [shape = 'u8[4096]{0}', space=vmem, size = 0x1000, scoped, tag = 'input window, operand 0, single buffered']
    #allocation3 [shape = 's32[1]{0}', space=sflag, size = 0x4, scoped, tag = 'scoped memory for tpu_custom_call.1']
    #allocation4 [shape = 's32[1]{0}', space=sflag, size = 0x4, scoped, tag = 'scoped memory for tpu_custom_call.1']
    #allocation5 [shape = 'u8[4096]{0}', space=vmem, size = 0x1000, scoped, tag = 'output window, operand 0, single buffered']
    %6 = vsyncpa [#allocation3], 0
    %7 = vsyncpa [#allocation4], 0
    // Predicated region
    $region2: #{tpu_custom_call.1} parent=1 // pred_check
      _
    $region3: #{tpu_custom_call.1} parent=1 // pred_check_branch
      %9 = sbr.rel (0) target = $region5
    $region4: #{tpu_custom_call.1} parent=1 // pred_region
      %s11 = ssub.s32 128, 128
      %12 = vsyncadd [#allocation3], %s11
      %s14 = sshll.u32 [#allocation2], 4
      %s15 = int_to_ptr.vmem [resolvable:$true] %s14
      %17 = dma.hbm_to_vmem [thread:$0]  %s0, 128, %s15, [#allocation3]
    $region5: #{tpu_custom_call.1} parent=1 // pred_fallthru
      _
    // Predicated region
    $region6: #{tpu_custom_call.1} parent=1 // pred_check
      _
    $region7: #{tpu_custom_call.1} parent=1 // pred_check_branch
      %19 = sbr.rel (0) target = $region9
    $region8: #{tpu_custom_call.1} parent=1 // pred_region
      %20 = dma.done [#allocation3], 128
    $region9: #{tpu_custom_call.1} parent=1 // pred_fallthru
      _
    %v21 = vld [vmem:[#allocation2] sm:$0xff]
    %v22 = vrot.slane %v21, 7
    %23 = vst [vmem:[#allocation5] sm:$0xff] %v22
    // Predicated region
    $region10: #{tpu_custom_call.1} parent=1 // pred_check
      _
    $region11: #{tpu_custom_call.1} parent=1 // pred_check_branch
      %25 = sbr.rel (0) target = $region13
    $region12: #{tpu_custom_call.1} parent=1 // pred_region
      %s27 = ssub.s32 128, 128
      %28 = vsyncadd [#allocation4], %s27
      %s30 = sshll.u32 [#allocation5], 4
      %s31 = int_to_ptr.vmem [resolvable:$true] %s30
      %33 = dma.vmem_to_hbm [thread:$0]  %s31, 128, %s1, [#allocation4]
    $region13: #{tpu_custom_call.1} parent=1 // pred_fallthru
      _
    // Predicated region
    $region14: #{tpu_custom_call.1} parent=1 // pred_check
      _
    $region15: #{tpu_custom_call.1} parent=1 // pred_check_branch
      %35 = sbr.rel (0) target = $region17
    $region16: #{tpu_custom_call.1} parent=1 // pred_region
      %36 = dma.done [#allocation4], 128
    $region17: #{tpu_custom_call.1} parent=1 // pred_fallthru
      _
    %37 = vsyncpa [#allocation3], 1
    %38 = vsyncpa [#allocation4], 1

</llo_original>
